<compile_context>
chip_gen: v7x
topology: tpu7x:2x2x1
jax: 0.10.0
libtpu: 0.0.40
codegen_flags: <defaults>
</compile_context>

<pallas_src>
import functools

import jax
import jax.numpy as jnp
import numpy as np
from jax import lax
from jax.experimental import pallas as pl
from jax.experimental.pallas import tpu as pltpu


# ----------------------------- Pallas kernel --------------------------------
def _mlp_forward_kernel(x_ref, w1_ref, b1_ref, w2_ref, b2_ref, w3_ref, b3_ref,
                        o_ref):
    """Dense shape-network forward on one batch tile.

    x_ref : [TB, in_dim]   native (row-major) input tile
    w*    : [out, in]      PyTorch Linear layout (resident in VMEM)
    b*    : [out, 1]       f32 columns
    o_ref : [out_dim, TB]  lane-dense output tile (batch on the lane axis)
    """
    x = x_ref[...].astype(w1_ref.dtype)          # MXU operand dtype (bf16/f32)
    # Layer 1: contract the feature axis of BOTH operands (W1 @ x^T -> [h1,TB]).
    # Flips batch onto the lane axis in-kernel; no host transpose/pad pass.
    h = lax.dot_general(w1_ref[...], x, (((1,), (1,)), ((), ())),
                        preferred_element_type=jnp.float32)
    h = jnp.tanh(h + b1_ref[...])                # f32 bias + tanh (EUP, v5e-safe)
    h = jnp.dot(w2_ref[...], h.astype(w2_ref.dtype),
                preferred_element_type=jnp.float32)
    h = jnp.tanh(h + b2_ref[...])
    out = jnp.dot(w3_ref[...], h.astype(w3_ref.dtype),
                  preferred_element_type=jnp.float32)
    o_ref[...] = (out + b3_ref[...]).astype(o_ref.dtype)


# ------------------------- parameter unflattening ---------------------------
def _set_parameters(parameters, layer_dims):
    """Replicates NetworkTemplate.set_parameters: split the flat vector in
    PyTorch named_parameters order (weight [out, in], then bias [out]) per
    Linear layer.  Weights stay in PyTorch [out, in] layout (the kernel
    computes W @ x^T); biases are returned as [out, 1] f32 columns."""
    ws, bs = [], []
    off = 0
    for d_in, d_out in zip(layer_dims[:-1], layer_dims[1:]):
        w = parameters[off: off + d_out * d_in].reshape(d_out, d_in)
        off += d_out * d_in
        b = parameters[off: off + d_out].reshape(d_out, 1)
        off += d_out
        ws.append(w)
        bs.append(b.astype(jnp.float32))
    return ws, bs


def n_parameters(layer_dims):
    return sum(o * i + o for i, o in zip(layer_dims[:-1], layer_dims[1:]))


def _round_up(x, m):
    return ((x + m - 1) // m) * m


# ------------------------------- wrapper -------------------------------------
@functools.partial(jax.jit, static_argnames=("layer_dims", "tb", "mxu_dtype"))
def workflow_forward(parameters, input_tensor, *, layer_dims, tb=8192,
                     mxu_dtype=jnp.bfloat16):
    """WorkflowModule.forward: set_parameters(parameters) then network(input).

    input_tensor: [batch, in_dim]; returns [batch, out_dim].
    mxu_dtype: dtype of the matmul operands (accumulation is always f32);
    pass jnp.float32 for an exact f32 path."""
    assert len(layer_dims) == 4, "kernel is specialized to a 3-layer MLP"
    ws, bs = _set_parameters(parameters, layer_dims)

    batch, in_dim = input_tensor.shape
    assert in_dim == layer_dims[0]
    out_dim = layer_dims[-1]
    out_dtype = input_tensor.dtype
    op_dtype = jnp.dtype(mxu_dtype) if mxu_dtype is not None else jnp.dtype(out_dtype)
    ws = [w.astype(op_dtype) for w in ws]        # tiny; resident MXU operands

    # --- Batch tile: as large as possible (amortizes ~0.35 us/step pipeline
    # bookkeeping), lane-aligned, but never a single giant step when batch
    # allows >=2 steps (so both v7x TensorCores get work).  Boundary tiles are
    # handled by Pallas' masked partial blocks -> no explicit padding pass.
    pb = _round_up(batch, 128)
    tb = max(128, (int(tb) // 128) * 128)
    if pb > 128:
        tb = min(tb, _round_up((pb + 1) // 2, 128))   # keep >= 2 grid steps
    tb = min(tb, pb)
    grid = (pl.cdiv(batch, tb),)

    in_specs = [
        pl.BlockSpec((tb, in_dim), lambda i: (i, 0)),   # streamed native batch tiles
        pl.BlockSpec(ws[0].shape, lambda i: (0, 0)),    # resident weights / biases
        pl.BlockSpec(bs[0].shape, lambda i: (0, 0)),
        pl.BlockSpec(ws[1].shape, lambda i: (0, 0)),
        pl.BlockSpec(bs[1].shape, lambda i: (0, 0)),
        pl.BlockSpec(ws[2].shape, lambda i: (0, 0)),
        pl.BlockSpec(bs[2].shape, lambda i: (0, 0)),
    ]
    out_spec = pl.BlockSpec((out_dim, tb), lambda i: (0, i))   # lane-dense store

    n_w = sum(a * b for a, b in zip(layer_dims[:-1], layer_dims[1:]))
    n_b = sum(layer_dims[1:])
    cost = pl.CostEstimate(
        flops=2 * batch * n_w,
        transcendentals=batch * sum(layer_dims[1:-1]),
        bytes_accessed=(jnp.dtype(out_dtype).itemsize * batch * (in_dim + out_dim)
                        + op_dtype.itemsize * n_w + 4 * n_b),
    )

    out_t = pl.pallas_call(
        _mlp_forward_kernel,
        out_shape=jax.ShapeDtypeStruct((out_dim, batch), out_dtype),
        grid=grid,
        in_specs=in_specs,
        out_specs=out_spec,
        compiler_params=pltpu.CompilerParams(
            dimension_semantics=("parallel",),      # megacore sharding on v7x
            vmem_limit_bytes=32 * 1024 * 1024,
        ),
        cost_estimate=cost,
    )(input_tensor, ws[0], bs[0], ws[1], bs[1], ws[2], bs[2])

    # Tiny [out_dim, batch] -> [batch, out_dim] flip kept only to preserve the
    # module's output layout; consumers wanting the lane-dense result can take
    # out_t directly.
    return jnp.transpose(out_t)


# --------------------------- pure-JAX reference ------------------------------
def _reference(parameters, input_tensor, layer_dims):
    ws, bs = _set_parameters(parameters, layer_dims)
    h = input_tensor.astype(jnp.float32)
    h = jnp.tanh(h @ ws[0].T + bs[0].T)
    h = jnp.tanh(h @ ws[1].T + bs[1].T)
    return h @ ws[2].T + bs[2].T


if __name__ == "__main__":
    # Small, deterministic example consistent with a NIF shape network:
    # 4 input coordinates -> 32 -> 32 -> 2 outputs.  batch=300 exercises the
    # >=2-step grid (tb clamps to 256) and a masked boundary tile; batch=77
    # exercises the single-tile small-batch path.
    layer_dims = (4, 32, 32, 2)
    key = jax.random.PRNGKey(0)
    k_params, k_input = jax.random.split(key)

    parameters = 0.1 * jax.random.normal(
        k_params, (n_parameters(layer_dims),), dtype=jnp.float32)

    # ---- f32 MXU path: exact check against the reference -------------------
    batch = 300
    input_tensor = jax.random.normal(
        k_input, (batch, layer_dims[0]), dtype=jnp.float32)
    out_f32 = workflow_forward(parameters, input_tensor,
                               layer_dims=layer_dims, mxu_dtype=jnp.float32)
    out_f32 = jax.block_until_ready(out_f32)
    ref = _reference(parameters, input_tensor, layer_dims)
    np.testing.assert_allclose(np.asarray(out_f32), np.asarray(ref),
                               rtol=1e-4, atol=1e-4)
    assert out_f32.shape == (batch, layer_dims[-1])

    # ---- default bf16-operand path (f32 accumulate): loose tolerance -------
    out_bf16 = workflow_forward(parameters, input_tensor, layer_dims=layer_dims)
    out_bf16 = jax.block_until_ready(out_bf16)
    np.testing.assert_allclose(np.asarray(out_bf16), np.asarray(ref),
                               rtol=5e-2, atol=1e-2)

    # ---- small-batch (single tile) path -------------------------------------
    small = 77
    out_small = workflow_forward(parameters, input_tensor[:small],
                                 layer_dims=layer_dims, mxu_dtype=jnp.float32)
    out_small = jax.block_until_ready(out_small)
    np.testing.assert_allclose(np.asarray(out_small), np.asarray(ref[:small]),
                               rtol=1e-4, atol=1e-4)
    assert out_small.shape == (small, layer_dims[-1])

    print("KERNEL_OK")
</pallas_src>

<mosaic_0001>
module attributes {stable_mosaic.version = 11 : i64} {
  func.func @_mlp_forward_kernel(%arg0: i32, %arg1: memref<256x4xf32, #tpu.memory_space<vmem>>, %arg2: memref<32x4xf32, #tpu.memory_space<vmem>>, %arg3: memref<32x1xf32, #tpu.memory_space<vmem>>, %arg4: memref<32x32xf32, #tpu.memory_space<vmem>>, %arg5: memref<32x1xf32, #tpu.memory_space<vmem>>, %arg6: memref<2x32xf32, #tpu.memory_space<vmem>>, %arg7: memref<2x1xf32, #tpu.memory_space<vmem>>, %arg8: memref<2x256xf32, #tpu.memory_space<vmem>>) attributes {dimension_semantics = [#tpu.dimension_semantics<parallel>], iteration_bounds = array<i64: 2>, scalar_prefetch = 0 : i64, scratch_operands = 0 : i64, tpu.core_type = #tpu.core_type<tc>, window_params = [{transform_indices = @transform_0, window_bounds = array<i64: 256, 4>}, {pipeline_mode = #tpu.pipeline_mode<synchronous>, transform_indices = @transform_1, window_bounds = array<i64: 32, 4>}, {pipeline_mode = #tpu.pipeline_mode<synchronous>, transform_indices = @transform_2, window_bounds = array<i64: 32, 1>}, {pipeline_mode = #tpu.pipeline_mode<synchronous>, transform_indices = @transform_3, window_bounds = array<i64: 32, 32>}, {pipeline_mode = #tpu.pipeline_mode<synchronous>, transform_indices = @transform_4, window_bounds = array<i64: 32, 1>}, {pipeline_mode = #tpu.pipeline_mode<synchronous>, transform_indices = @transform_5, window_bounds = array<i64: 2, 32>}, {pipeline_mode = #tpu.pipeline_mode<synchronous>, transform_indices = @transform_6, window_bounds = array<i64: 2, 1>}, {transform_indices = @transform_7, window_bounds = array<i64: 2, 256>}]} {
    %c0 = arith.constant 0 : index
    %c0_0 = arith.constant 0 : index
    %0 = vector.load %arg1[%c0, %c0_0] : memref<256x4xf32, #tpu.memory_space<vmem>>, vector<256x4xf32>
    %c0_1 = arith.constant 0 : index
    %c0_2 = arith.constant 0 : index
    %1 = vector.load %arg2[%c0_1, %c0_2] : memref<32x4xf32, #tpu.memory_space<vmem>>, vector<32x4xf32>
    %cst = arith.constant dense<0.000000e+00> : vector<32x256xf32>
    %2 = tpu.matmul %1, %0, %cst {dimension_numbers = #tpu.dot_dimension_numbers<[1], [1], [0], [0], [0, 0, 1, 0], [], []>} : vector<32x4xf32>, vector<256x4xf32>, vector<32x256xf32> -> vector<32x256xf32>
    %c0_3 = arith.constant 0 : index
    %c0_4 = arith.constant 0 : index
    %3 = vector.load %arg3[%c0_3, %c0_4] : memref<32x1xf32, #tpu.memory_space<vmem>>, vector<32x1xf32>
    %4 = vector.broadcast %3 : vector<32x1xf32> to vector<32x256xf32>
    %5 = arith.addf %2, %4 : vector<32x256xf32>
    %6 = math.tanh %5 : vector<32x256xf32>
    %c0_5 = arith.constant 0 : index
    %c0_6 = arith.constant 0 : index
    %7 = vector.load %arg4[%c0_5, %c0_6] : memref<32x32xf32, #tpu.memory_space<vmem>>, vector<32x32xf32>
    %cst_7 = arith.constant dense<0.000000e+00> : vector<32x256xf32>
    %8 = tpu.matmul %7, %6, %cst_7 {dimension_numbers = #tpu.dot_dimension_numbers<[1], [0], [0], [1], [0, 0, 1, 1], [], []>} : vector<32x32xf32>, vector<32x256xf32>, vector<32x256xf32> -> vector<32x256xf32>
    %c0_8 = arith.constant 0 : index
    %c0_9 = arith.constant 0 : index
    %9 = vector.load %arg5[%c0_8, %c0_9] : memref<32x1xf32, #tpu.memory_space<vmem>>, vector<32x1xf32>
    %10 = vector.broadcast %9 : vector<32x1xf32> to vector<32x256xf32>
    %11 = arith.addf %8, %10 : vector<32x256xf32>
    %12 = math.tanh %11 : vector<32x256xf32>
    %c0_10 = arith.constant 0 : index
    %c0_11 = arith.constant 0 : index
    %13 = vector.load %arg6[%c0_10, %c0_11] : memref<2x32xf32, #tpu.memory_space<vmem>>, vector<2x32xf32>
    %cst_12 = arith.constant dense<0.000000e+00> : vector<2x256xf32>
    %14 = tpu.matmul %13, %12, %cst_12 {dimension_numbers = #tpu.dot_dimension_numbers<[1], [0], [0], [1], [0, 0, 1, 1], [], []>} : vector<2x32xf32>, vector<32x256xf32>, vector<2x256xf32> -> vector<2x256xf32>
    %c0_13 = arith.constant 0 : index
    %c0_14 = arith.constant 0 : index
    %15 = vector.load %arg7[%c0_13, %c0_14] : memref<2x1xf32, #tpu.memory_space<vmem>>, vector<2x1xf32>
    %16 = vector.broadcast %15 : vector<2x1xf32> to vector<2x256xf32>
    %17 = arith.addf %14, %16 : vector<2x256xf32>
    %c0_15 = arith.constant 0 : index
    %c0_16 = arith.constant 0 : index
    %18 = vector.load %arg8[%c0_15, %c0_16] : memref<2x256xf32, #tpu.memory_space<vmem>>, vector<2x256xf32>
    tpu.vector_store %arg8[%c0_15, %c0_16], %17 {strides = array<i32>} : memref<2x256xf32, #tpu.memory_space<vmem>>, vector<2x256xf32>,
    return
  }
  func.func @transform_0(%arg0: i32) -> (i32, i32) {
    %c0_i32 = arith.constant 0 : i32
    %c0_i32_0 = arith.constant 0 : i32
    return %arg0, %c0_i32 : i32, i32
  }
  func.func @transform_1(%arg0: i32) -> (i32, i32) {
    %c0_i32 = arith.constant 0 : i32
    %c0_i32_0 = arith.constant 0 : i32
    %c0_i32_1 = arith.constant 0 : i32
    return %c0_i32, %c0_i32_0 : i32, i32
  }
  func.func @transform_2(%arg0: i32) -> (i32, i32) {
    %c0_i32 = arith.constant 0 : i32
    %c0_i32_0 = arith.constant 0 : i32
    %c0_i32_1 = arith.constant 0 : i32
    return %c0_i32, %c0_i32_0 : i32, i32
  }
  func.func @transform_3(%arg0: i32) -> (i32, i32) {
    %c0_i32 = arith.constant 0 : i32
    %c0_i32_0 = arith.constant 0 : i32
    %c0_i32_1 = arith.constant 0 : i32
    return %c0_i32, %c0_i32_0 : i32, i32
  }
  func.func @transform_4(%arg0: i32) -> (i32, i32) {
    %c0_i32 = arith.constant 0 : i32
    %c0_i32_0 = arith.constant 0 : i32
    %c0_i32_1 = arith.constant 0 : i32
    return %c0_i32, %c0_i32_0 : i32, i32
  }
  func.func @transform_5(%arg0: i32) -> (i32, i32) {
    %c0_i32 = arith.constant 0 : i32
    %c0_i32_0 = arith.constant 0 : i32
    %c0_i32_1 = arith.constant 0 : i32
    return %c0_i32, %c0_i32_0 : i32, i32
  }
  func.func @transform_6(%arg0: i32) -> (i32, i32) {
    %c0_i32 = arith.constant 0 : i32
    %c0_i32_0 = arith.constant 0 : i32
    %c0_i32_1 = arith.constant 0 : i32
    return %c0_i32, %c0_i32_0 : i32, i32
  }
  func.func @transform_7(%arg0: i32) -> (i32, i32) {
    %c0_i32 = arith.constant 0 : i32
    %c0_i32_0 = arith.constant 0 : i32
    return %c0_i32, %arg0 : i32, i32
  }
}

</mosaic_0001>

<llo_original>
// kernel: workflow_forward.1
$region0: #{workflow_forward.1}
  #allocation0 [shape = 'u32[]', space=smem, size = 0x4, offset = 0x4, fixed_abs, tag = 'smem constant byte address 0x4 - core index']
  #allocation1 [shape = 'u32[144,128]{1,0:T(1,128)}', space=vmem, size = 0x12000, scoped, tag = 'internal scratch']
  %s0 = inlined_call_operand.vmem [shape: f32[300,4], index: 0, kind: input, shape index: {}]
  %s1 = inlined_call_operand.vmem [shape: f32[32,4], index: 1, kind: input, shape index: {}]
  %s2 = inlined_call_operand.vmem [shape: f32[32,1], index: 2, kind: input, shape index: {}]
  %s3 = inlined_call_operand.vmem [shape: f32[32,32], index: 3, kind: input, shape index: {}]
  %s4 = inlined_call_operand.vmem [shape: f32[32,1], index: 4, kind: input, shape index: {}]
  %s5 = inlined_call_operand.vmem [shape: f32[2,32], index: 5, kind: input, shape index: {}]
  %s6 = inlined_call_operand.vmem [shape: f32[2,1], index: 6, kind: input, shape index: {}]
  %s7 = inlined_call_operand.hbm [shape: f32[2,300], index: 7, kind: output, shape index: {}]
  %s8 = sld [smem:[#allocation0]]
  $region61: #{workflow_forward.1} parent=0
    _
  %s10 = ssub.s32 1, %s8
  %s11 = scalar_select 0, %s10, %s8
  $region1: #{workflow_forward.1} parent=0
    #allocation2 [shape = 'u8[4096]{0}', space=vmem, size = 0x1000, scoped, tag = 'output window, operand 0']
    #allocation3 [shape = 's32[2]{0}', space=sflag, size = 0x8, scoped, tag = 'scoped memory for workflow_forward.1']
    %12 = vsyncpa [#allocation3], 0
    %s13 = scalar_lea.sflag [#allocation3], 1
    %14 = vsyncpa %s13, 0
    loop: start=0, step=1, limit=4
    $region2: #{workflow_forward.1} parent=1 // loop_pre_header
      _
    $region3: #{workflow_forward.1} parent=1 // loop_header
      %s16 = sphi 0, %s20
      %p17 = scmp.ge.s32.totalorder %s16, 4
      %s26 = sphi 0, %s28
      %s29 = sphi 0, %s26
      %s30 = sphi 0, %s29
      %s46 = sphi 0, %s30
      %s50 = sphi 0, %s50
      %s52 = sphi 0, %s50
      %s53 = sphi 0, %s52
      %s67 = sphi 0, %s53
      %s71 = sphi 0, %s71
      %s73 = sphi 0, %s71
      %s74 = sphi 0, %s73
      %s88 = sphi 0, %s74
      %s92 = sphi 0, %s92
      %s94 = sphi 0, %s92
      %s95 = sphi 0, %s94
      %s109 = sphi 0, %s95
      %s113 = sphi 0, %s113
      %s115 = sphi 0, %s113
      %s116 = sphi 0, %s115
      %s130 = sphi 0, %s116
      %s134 = sphi 0, %s134
      %s136 = sphi 0, %s134
      %s137 = sphi 0, %s136
      %s151 = sphi 0, %s137
      %s155 = sphi 0, %s155
      %s157 = sphi 0, %s155
      %s158 = sphi 0, %s157
      %s172 = sphi 0, %s158
      %s178 = sphi 0, %s180
      %s181 = sphi 0, %s178
      %s182 = sphi 0, %s181
      %s198 = sphi 0, %s182
    $region4: #{workflow_forward.1} parent=1 // loop_header_branch
      %19 = sbr.rel (%p17) target = $region8
    $region5: #{workflow_forward.1} parent=1 // loop_body
      %s21 = ssub.s32 %s16, 1
      %s22 = ssub.s32 %s16, 2
      %s23 = sadd.s32 %s16, 1
      %s24 = ssub.s32 %s16, %s23
      %p25 = scmp.eq.s32.totalorder %s24, 0
      %s27 = sadd.s32 %s26, 1
      %s28 = scalar_select %p25, %s26, %s27
      %p31 = pneg %p25
      %p32 = scmp.eq.s32.totalorder %s16, 1
      %p33 = por %p31, %p32
      %p34 = scmp.ne.s32.totalorder %s26, %s29
      %p35 = scmp.eq.s32.totalorder %s16, 0
      %p36 = por %p34, %p35
      %p37 = scmp.ne.s32.totalorder %s26, %s29
      %p38 = scmp.eq.s32.totalorder %s21, 1
      %p39 = por %p37, %p38
      %p40 = scmp.ne.s32.totalorder %s29, %s30
      %p41 = scmp.eq.s32.totalorder %s21, 0
      %p42 = por %p40, %p41
      %p43 = scmp.ne.s32.totalorder %s29, %s30
      %p44 = scmp.eq.s32.totalorder %s22, 1
      %p45 = por %p43, %p44
      %p47 = scmp.ne.s32.totalorder %s30, %s46
      %p48 = scmp.eq.s32.totalorder %s22, 0
      %p49 = por %p47, %p48
      %s51 = sadd.s32 %s50, 1
      %p54 = scmp.eq.s32.totalorder %s16, 1
      %p55 = scmp.ne.s32.totalorder %s50, %s52
      %p56 = scmp.eq.s32.totalorder %s16, 0
      %p57 = por %p55, %p56
      %p58 = scmp.ne.s32.totalorder %s50, %s52
      %p59 = scmp.eq.s32.totalorder %s21, 1
      %p60 = por %p58, %p59
      %p61 = scmp.ne.s32.totalorder %s52, %s53
      %p62 = scmp.eq.s32.totalorder %s21, 0
      %p63 = por %p61, %p62
      %p64 = scmp.ne.s32.totalorder %s52, %s53
      %p65 = scmp.eq.s32.totalorder %s22, 1
      %p66 = por %p64, %p65
      %p68 = scmp.ne.s32.totalorder %s53, %s67
      %p69 = scmp.eq.s32.totalorder %s22, 0
      %p70 = por %p68, %p69
      %s72 = sadd.s32 %s71, 1
      %p75 = scmp.eq.s32.totalorder %s16, 1
      %p76 = scmp.ne.s32.totalorder %s71, %s73
      %p77 = scmp.eq.s32.totalorder %s16, 0
      %p78 = por %p76, %p77
      %p79 = scmp.ne.s32.totalorder %s71, %s73
      %p80 = scmp.eq.s32.totalorder %s21, 1
      %p81 = por %p79, %p80
      %p82 = scmp.ne.s32.totalorder %s73, %s74
      %p83 = scmp.eq.s32.totalorder %s21, 0
      %p84 = por %p82, %p83
      %p85 = scmp.ne.s32.totalorder %s73, %s74
      %p86 = scmp.eq.s32.totalorder %s22, 1
      %p87 = por %p85, %p86
      %p89 = scmp.ne.s32.totalorder %s74, %s88
      %p90 = scmp.eq.s32.totalorder %s22, 0
      %p91 = por %p89, %p90
      %s93 = sadd.s32 %s92, 1
      %p96 = scmp.eq.s32.totalorder %s16, 1
      %p97 = scmp.ne.s32.totalorder %s92, %s94
      %p98 = scmp.eq.s32.totalorder %s16, 0
      %p99 = por %p97, %p98
      %p100 = scmp.ne.s32.totalorder %s92, %s94
      %p101 = scmp.eq.s32.totalorder %s21, 1
      %p102 = por %p100, %p101
      %p103 = scmp.ne.s32.totalorder %s94, %s95
      %p104 = scmp.eq.s32.totalorder %s21, 0
      %p105 = por %p103, %p104
      %p106 = scmp.ne.s32.totalorder %s94, %s95
      %p107 = scmp.eq.s32.totalorder %s22, 1
      %p108 = por %p106, %p107
      %p110 = scmp.ne.s32.totalorder %s95, %s109
      %p111 = scmp.eq.s32.totalorder %s22, 0
      %p112 = por %p110, %p111
      %s114 = sadd.s32 %s113, 1
      %p117 = scmp.eq.s32.totalorder %s16, 1
      %p118 = scmp.ne.s32.totalorder %s113, %s115
      %p119 = scmp.eq.s32.totalorder %s16, 0
      %p120 = por %p118, %p119
      %p121 = scmp.ne.s32.totalorder %s113, %s115
      %p122 = scmp.eq.s32.totalorder %s21, 1
      %p123 = por %p121, %p122
      %p124 = scmp.ne.s32.totalorder %s115, %s116
      %p125 = scmp.eq.s32.totalorder %s21, 0
      %p126 = por %p124, %p125
      %p127 = scmp.ne.s32.totalorder %s115, %s116
      %p128 = scmp.eq.s32.totalorder %s22, 1
      %p129 = por %p127, %p128
      %p131 = scmp.ne.s32.totalorder %s116, %s130
      %p132 = scmp.eq.s32.totalorder %s22, 0
      %p133 = por %p131, %p132
      %s135 = sadd.s32 %s134, 1
      %p138 = scmp.eq.s32.totalorder %s16, 1
      %p139 = scmp.ne.s32.totalorder %s134, %s136
      %p140 = scmp.eq.s32.totalorder %s16, 0
      %p141 = por %p139, %p140
      %p142 = scmp.ne.s32.totalorder %s134, %s136
      %p143 = scmp.eq.s32.totalorder %s21, 1
      %p144 = por %p142, %p143
      %p145 = scmp.ne.s32.totalorder %s136, %s137
      %p146 = scmp.eq.s32.totalorder %s21, 0
      %p147 = por %p145, %p146
      %p148 = scmp.ne.s32.totalorder %s136, %s137
      %p149 = scmp.eq.s32.totalorder %s22, 1
      %p150 = por %p148, %p149
      %p152 = scmp.ne.s32.totalorder %s137, %s151
      %p153 = scmp.eq.s32.totalorder %s22, 0
      %p154 = por %p152, %p153
      %s156 = sadd.s32 %s155, 1
      %p159 = scmp.eq.s32.totalorder %s16, 1
      %p160 = scmp.ne.s32.totalorder %s155, %s157
      %p161 = scmp.eq.s32.totalorder %s16, 0
      %p162 = por %p160, %p161
      %p163 = scmp.ne.s32.totalorder %s155, %s157
      %p164 = scmp.eq.s32.totalorder %s21, 1
      %p165 = por %p163, %p164
      %p166 = scmp.ne.s32.totalorder %s157, %s158
      %p167 = scmp.eq.s32.totalorder %s21, 0
      %p168 = por %p166, %p167
      %p169 = scmp.ne.s32.totalorder %s157, %s158
      %p170 = scmp.eq.s32.totalorder %s22, 1
      %p171 = por %p169, %p170
      %p173 = scmp.ne.s32.totalorder %s158, %s172
      %p174 = scmp.eq.s32.totalorder %s22, 0
      %p175 = por %p173, %p174
      %s176 = ssub.s32 %s16, %s23
      %p177 = scmp.eq.s32.totalorder %s176, 0
      %s179 = sadd.s32 %s178, 1
      %s180 = scalar_select %p177, %s178, %s179
      %p183 = pneg %p177
      %p184 = scmp.eq.s32.totalorder %s16, 1
      %p185 = por %p183, %p184
      %p186 = scmp.ne.s32.totalorder %s178, %s181
      %p187 = scmp.eq.s32.totalorder %s16, 0
      %p188 = por %p186, %p187
      %p189 = scmp.ne.s32.totalorder %s178, %s181
      %p190 = scmp.eq.s32.totalorder %s21, 1
      %p191 = por %p189, %p190
      %p192 = scmp.ne.s32.totalorder %s181, %s182
      %p193 = scmp.eq.s32.totalorder %s21, 0
      %p194 = por %p192, %p193
      %p195 = scmp.ne.s32.totalorder %s181, %s182
      %p196 = scmp.eq.s32.totalorder %s22, 1
      %p197 = por %p195, %p196
      %p199 = scmp.ne.s32.totalorder %s182, %s198
      %p200 = scmp.eq.s32.totalorder %s22, 0
      %p201 = por %p199, %p200
      %p202 = scmp.le.s32.totalorder 1, %s16
      %p203 = scmp.lt.s32.totalorder %s16, 3
      %p204 = pnand %p202, %p203
      %p205 = pneg %p204
      // Predicated region
      $region9: #{workflow_forward.1} parent=5 // pred_check
        _
      $region10: #{workflow_forward.1} parent=5 // pred_check_branch
        %207 = sbr.rel (%p204) target = $region12
      $region11: #{workflow_forward.1} parent=5 // pred_region
        %s208 = ssub.s32 %s16, 1
        // Predicated region
        $region13: #{workflow_forward.1} parent=11 // pred_check
          %p209 = pneg %p63
        $region14: #{workflow_forward.1} parent=11 // pred_check_branch
          %211 = sbr.rel (%p209) target = $region16
        $region15: #{workflow_forward.1} parent=11 // pred_region
          _
        $region16: #{workflow_forward.1} parent=11 // pred_fallthru
          _
        // Predicated region
        $region17: #{workflow_forward.1} parent=11 // pred_check
          %p212 = pneg %p84
        $region18: #{workflow_forward.1} parent=11 // pred_check_branch
          %214 = sbr.rel (%p212) target = $region20
        $region19: #{workflow_forward.1} parent=11 // pred_region
          _
        $region20: #{workflow_forward.1} parent=11 // pred_fallthru
          _
        // Predicated region
        $region21: #{workflow_forward.1} parent=11 // pred_check
          %p215 = pneg %p105
        $region22: #{workflow_forward.1} parent=11 // pred_check_branch
          %217 = sbr.rel (%p215) target = $region24
        $region23: #{workflow_forward.1} parent=11 // pred_region
          _
        $region24: #{workflow_forward.1} parent=11 // pred_fallthru
          _
        // Predicated region
        $region25: #{workflow_forward.1} parent=11 // pred_check
          %p218 = pneg %p126
        $region26: #{workflow_forward.1} parent=11 // pred_check_branch
          %220 = sbr.rel (%p218) target = $region28
        $region27: #{workflow_forward.1} parent=11 // pred_region
          _
        $region28: #{workflow_forward.1} parent=11 // pred_fallthru
          _
        // Predicated region
        $region29: #{workflow_forward.1} parent=11 // pred_check
          %p221 = pneg %p147
        $region30: #{workflow_forward.1} parent=11 // pred_check_branch
          %223 = sbr.rel (%p221) target = $region32
        $region31: #{workflow_forward.1} parent=11 // pred_region
          _
        $region32: #{workflow_forward.1} parent=11 // pred_fallthru
          _
        // Predicated region
        $region33: #{workflow_forward.1} parent=11 // pred_check
          %p224 = pneg %p168
        $region34: #{workflow_forward.1} parent=11 // pred_check_branch
          %226 = sbr.rel (%p224) target = $region36
        $region35: #{workflow_forward.1} parent=11 // pred_region
          _
        $region36: #{workflow_forward.1} parent=11 // pred_fallthru
          _
      $region12: #{workflow_forward.1} parent=5 // pred_fallthru
        _
      %p227 = scmp.lt.s32.totalorder %s16, 2
      // Predicated region
      $region37: #{workflow_forward.1} parent=5 // pred_check
        %p228 = pneg %p227
      $region38: #{workflow_forward.1} parent=5 // pred_check_branch
        %230 = sbr.rel (%p228) target = $region40
      $region39: #{workflow_forward.1} parent=5 // pred_region
        // Predicated region
        $region41: #{workflow_forward.1} parent=39 // pred_check
          %p231 = pneg %p36
        $region42: #{workflow_forward.1} parent=39 // pred_check_branch
          %233 = sbr.rel (%p231) target = $region44
        $region43: #{workflow_forward.1} parent=39 // pred_region
          %s234 = smul.u32 32, %s16
          %s235 = ssub.s32 38, %s234
          %p236 = scmp.lt.s32.totalorder %s235, 32
          %s237 = scalar_select %p236, %s235, 32
          %s238 = smul.u32 128, %s237
          %p239 = scmp.lt.s32.totalorder %s234, 37
          %s240 = scalar_select %p239, %s234, 37
          %s241 = smul.addr %s240, 8
          %s242 = scalar_lea.vmem %s0, %s241
          %s243 = smul.u32 32, %s16
          %s244 = ssub.s32 38, %s243
          %p245 = scmp.lt.s32.totalorder %s244, 32
          %s246 = scalar_select %p245, %s244, 32
          %s247 = smul.u32 128, %s246
        $region44: #{workflow_forward.1} parent=39 // pred_fallthru
          _
      $region40: #{workflow_forward.1} parent=5 // pred_fallthru
        _
      %p248 = scmp.le.s32.totalorder 1, %s16
      %p249 = scmp.lt.s32.totalorder %s16, 3
      %p250 = pnand %p248, %p249
      %p251 = pneg %p250
      // Predicated region
      $region45: #{workflow_forward.1} parent=5 // pred_check
        _
      $region46: #{workflow_forward.1} parent=5 // pred_check_branch
        %253 = sbr.rel (%p250) target = $region48
      $region47: #{workflow_forward.1} parent=5 // pred_region
        %s254 = ssub.s32 %s16, 1
        %s255 = smul.u32 32, %s21
        %s256 = ssub.s32 38, %s255
        %p257 = scmp.lt.s32.totalorder %s256, 32
        %s258 = scalar_select %p257, %s256, 32
        %s259 = smul.u32 128, %s258
        %p260 = scmp.lt.s32.totalorder %s255, 37
        %s261 = scalar_select %p260, %s255, 37
        %s262 = smul.addr %s261, 8
        %s263 = scalar_lea.vmem %s0, %s262
        %p264 = pneg %p42
        %p265 = pneg %p39
        %p266 = pneg %p63
        %p267 = pneg %p60
        %p268 = pneg %p84
        %p269 = pneg %p81
        %p270 = pneg %p105
        %p271 = pneg %p102
        %p272 = pneg %p126
        %p273 = pneg %p123
        %p274 = pneg %p147
        %p275 = pneg %p144
        %p276 = pneg %p168
        %p277 = pneg %p165
        %p278 = pneg %p194
        %p279 = pneg %p191
        %s280 = sand.u32 %s181, 1
        %s281 = scalar_lea.sflag [#allocation3], %s280
        %s282 = sand.u32 %s181, 1
        %s283 = smul.addr %s282, 4
        %s284 = scalar_lea.vmem [#allocation2], %s283
        %s285 = smul.u32 32, %s21
        %s286 = ssub.s32 38, %s285
        %p287 = scmp.lt.s32.totalorder %s286, 32
        %s288 = scalar_select %p287, %s286, 32
        %s289 = smul.u32 128, %s288
        %p290 = scmp.lt.s32.totalorder %s285, 37
        %s291 = scalar_select %p290, %s285, 37
        %s292 = smul.addr %s291, 8
        %s293 = scalar_lea.vmem %s0, %s292
        %s294 = smul.u32 32, %s21
        %s295 = ssub.s32 38, %s294
        %p296 = scmp.lt.s32.totalorder %s295, 32
        %s297 = scalar_select %p296, %s295, 32
        %s298 = smul.u32 128, %s297
        %s299 = smul.u32 2, %s21
        %s300 = ssub.s32 3, %s299
        %p301 = scmp.lt.s32.totalorder %s300, 2
        %s302 = scalar_select %p301, %s300, 2
        %s303 = smul.u32 32, %s302
        %v304 = vld [vmem:[%s293] sm:$0xff]
        %v305 = vld [vmem:[%s293 + $0x8] sm:$0xff]
        %v306 = vld [vmem:[%s293 + $0x10] sm:$0xff]
        %v307 = vld [vmem:[%s293 + $0x18] sm:$0xff]
        %v308 = vld [vmem:[%s293 + $0x20] sm:$0xff]
        %v309 = vld [vmem:[%s293 + $0x28] sm:$0xff]
        %v310 = vld [vmem:[%s293 + $0x30] sm:$0xff]
        %v311 = vld [vmem:[%s293 + $0x38] sm:$0xff]
        %v312 = vld [vmem:[%s293 + $0x40] sm:$0xff]
        %v313 = vld [vmem:[%s293 + $0x48] sm:$0xff]
        %v314 = vld [vmem:[%s293 + $0x50] sm:$0xff]
        %v315 = vld [vmem:[%s293 + $0x58] sm:$0xff]
        %v316 = vld [vmem:[%s293 + $0x60] sm:$0xff]
        %v317 = vld [vmem:[%s293 + $0x68] sm:$0xff]
        %v318 = vld [vmem:[%s293 + $0x70] sm:$0xff]
        %v319 = vld [vmem:[%s293 + $0x78] sm:$0xff]
        %v320 = vld [vmem:[%s293 + $0x80] sm:$0xff]
        %v321 = vld [vmem:[%s293 + $0x88] sm:$0xff]
        %v322 = vld [vmem:[%s293 + $0x90] sm:$0xff]
        %v323 = vld [vmem:[%s293 + $0x98] sm:$0xff]
        %v324 = vld [vmem:[%s293 + $0xa0] sm:$0xff]
        %v325 = vld [vmem:[%s293 + $0xa8] sm:$0xff]
        %v326 = vld [vmem:[%s293 + $0xb0] sm:$0xff]
        %v327 = vld [vmem:[%s293 + $0xb8] sm:$0xff]
        %v328 = vld [vmem:[%s293 + $0xc0] sm:$0xff]
        %v329 = vld [vmem:[%s293 + $0xc8] sm:$0xff]
        %v330 = vld [vmem:[%s293 + $0xd0] sm:$0xff]
        %v331 = vld [vmem:[%s293 + $0xd8] sm:$0xff]
        %v332 = vld [vmem:[%s293 + $0xe0] sm:$0xff]
        %v333 = vld [vmem:[%s293 + $0xe8] sm:$0xff]
        %v334 = vld [vmem:[%s293 + $0xf0] sm:$0xff]
        %v335 = vld [vmem:[%s293 + $0xf8] sm:$0xff]
        %v336 = vld [vmem:[%s1] sm:$0xff]
        %v337 = vld [vmem:[%s1 + $0x8] sm:$0xff]
        %v338 = vld [vmem:[%s1 + $0x10] sm:$0xff]
        %v339 = vld [vmem:[%s1 + $0x18] sm:$0xff]
        %v340 = vld [vmem:[%s2] sm:$0xff]
        %v341 = vld [vmem:[%s2 + $0x8] sm:$0xff]
        %v342 = vld [vmem:[%s2 + $0x10] sm:$0xff]
        %v343 = vld [vmem:[%s2 + $0x18] sm:$0xff]
        %345 = vset.pattern.permute.xlu0 0
        %346 = vperm.xlu0 %345, %v340
        %v347 = vpop.permute.xlu0 %346
        %350 = vset.pattern.permute.xlu0 0
        %351 = vperm.xlu0 %350, %v341
        %v352 = vpop.permute.xlu0 %351
        %355 = vset.pattern.permute.xlu0 0
        %356 = vperm.xlu0 %355, %v342
        %v357 = vpop.permute.xlu0 %356
        %360 = vset.pattern.permute.xlu0 0
        %361 = vperm.xlu0 %360, %v343
        %v362 = vpop.permute.xlu0 %361
        %vm364 = vcmask 31744
        %v366 = vsel %vm364, %v336, 0
        %v369 = vsel %vm364, %v337, 0
        %v372 = vsel %vm364, %v338, 0
        %v375 = vsel %vm364, %v339, 0
        %v378 = vsel %vm364, %v304, 0
        %v381 = vsel %vm364, %v305, 0
        %v384 = vsel %vm364, %v306, 0
        %v387 = vsel %vm364, %v307, 0
        %v390 = vsel %vm364, %v308, 0
        %v393 = vsel %vm364, %v309, 0
        %v396 = vsel %vm364, %v310, 0
        %v399 = vsel %vm364, %v311, 0
        %v402 = vsel %vm364, %v312, 0
        %v405 = vsel %vm364, %v313, 0
        %v408 = vsel %vm364, %v314, 0
        %v411 = vsel %vm364, %v315, 0
        %v414 = vsel %vm364, %v316, 0
        %v417 = vsel %vm364, %v317, 0
        %v420 = vsel %vm364, %v318, 0
        %v423 = vsel %vm364, %v319, 0
        %v426 = vsel %vm364, %v320, 0
        %v429 = vsel %vm364, %v321, 0
        %v432 = vsel %vm364, %v322, 0
        %v435 = vsel %vm364, %v323, 0
        %v438 = vsel %vm364, %v324, 0
        %v441 = vsel %vm364, %v325, 0
        %v444 = vsel %vm364, %v326, 0
        %v447 = vsel %vm364, %v327, 0
        %v450 = vsel %vm364, %v328, 0
        %v453 = vsel %vm364, %v329, 0
        %v456 = vsel %vm364, %v330, 0
        %v459 = vsel %vm364, %v331, 0
        %v462 = vsel %vm364, %v332, 0
        %v465 = vsel %vm364, %v333, 0
        %v468 = vsel %vm364, %v334, 0
        %v471 = vsel %vm364, %v335, 0
        %473 = vmatprep.subr.mxu0 0.0
        %474 = vmatpush1.xpose.msra.mxu0 %v378
        %475 = vmatprep.subr.mxu0 0.0
        %476 = vmatpush1.xpose.msra.mxu0 %v381
        %477 = vmatprep.subr.mxu0 0.0
        %478 = vmatpush1.xpose.msra.mxu0 %v384
        %479 = vmatprep.subr.mxu0 0.0
        %480 = vmatpush1.xpose.msra.mxu0 %v387
        %481 = vmatprep.subr.mxu0 0.0
        %482 = vmatpush1.xpose.msra.mxu0 %v390
        %483 = vmatprep.subr.mxu0 0.0
        %484 = vmatpush1.xpose.msra.mxu0 %v393
        %485 = vmatprep.subr.mxu0 0.0
        %486 = vmatpush1.xpose.msra.mxu0 %v396
        %487 = vmatprep.subr.mxu0 0.0
        %488 = vmatpush1.xpose.msra.mxu0 %v399
        %489 = vmatprep.subr.mxu0 0.0
        %490 = vmatpush1.xpose.msra.mxu0 %v402
        %491 = vmatprep.subr.mxu0 0.0
        %492 = vmatpush1.xpose.msra.mxu0 %v405
        %493 = vmatprep.subr.mxu0 0.0
        %494 = vmatpush1.xpose.msra.mxu0 %v408
        %495 = vmatprep.subr.mxu0 0.0
        %496 = vmatpush1.xpose.msra.mxu0 %v411
        %497 = vmatprep.subr.mxu0 0.0
        %498 = vmatpush1.xpose.msra.mxu0 %v414
        %499 = vmatprep.subr.mxu0 0.0
        %500 = vmatpush1.xpose.msra.mxu0 %v417
        %501 = vmatprep.subr.mxu0 0.0
        %502 = vmatpush1.xpose.msra.mxu0 %v420
        %503 = vmatprep.subr.mxu0 0.0
        %504 = vmatpush1.xpose.msra.mxu0 %v423
        %505 = vmatprep.subr.mxu0 0.0
        %506 = vmatpush1.xpose.msra.mxu0 %v426
        %507 = vmatprep.subr.mxu0 0.0
        %508 = vmatpush1.xpose.msra.mxu0 %v429
        %509 = vmatprep.subr.mxu0 0.0
        %510 = vmatpush1.xpose.msra.mxu0 %v432
        %511 = vmatprep.subr.mxu0 0.0
        %512 = vmatpush1.xpose.msra.mxu0 %v435
        %513 = vmatprep.subr.mxu0 0.0
        %514 = vmatpush1.xpose.msra.mxu0 %v438
        %515 = vmatprep.subr.mxu0 0.0
        %516 = vmatpush1.xpose.msra.mxu0 %v441
        %517 = vmatprep.subr.mxu0 0.0
        %518 = vmatpush1.xpose.msra.mxu0 %v444
        %519 = vmatprep.subr.mxu0 0.0
        %520 = vmatpush1.xpose.msra.mxu0 %v447
        %521 = vmatprep.subr.mxu0 0.0
        %522 = vmatpush1.xpose.msra.mxu0 %v450
        %523 = vmatprep.subr.mxu0 0.0
        %524 = vmatpush1.xpose.msra.mxu0 %v453
        %525 = vmatprep.subr.mxu0 0.0
        %526 = vmatpush1.xpose.msra.mxu0 %v456
        %527 = vmatprep.subr.mxu0 0.0
        %528 = vmatpush1.xpose.msra.mxu0 %v459
        %529 = vmatprep.subr.mxu0 0.0
        %530 = vmatpush1.xpose.msra.mxu0 %v462
        %531 = vmatprep.subr.mxu0 0.0
        %532 = vmatpush1.xpose.msra.mxu0 %v465
        %533 = vmatprep.subr.mxu0 0.0
        %534 = vmatpush1.xpose.msra.mxu0 %v468
        %535 = vmatprep.subr.mxu0 0.0
        %536 = vmatpush1.xpose.msra.mxu0 %v471
        %537 = vmatprep.mubr.f32.mxu0 0.0
        %538 = vmatmul.mubr.f32.gmra.mrb[0].mxu0 %v366
        %v539 = vpop.f32.mrb[0].mxu0
        %v540 = vadd.f32 %v347, %v539
        %v541 = vpop.f32.mrb[0].mxu0
        %v542 = vadd.f32 %v347, %v541
        %543 = vmatprep.mubr.f32.mxu0 0.0
        %544 = vmatmul.mubr.f32.gmra.mrb[0].mxu0 %v369
        %v545 = vpop.f32.mrb[0].mxu0
        %v546 = vadd.f32 %v352, %v545
        %v547 = vpop.f32.mrb[0].mxu0
        %v548 = vadd.f32 %v352, %v547
        %549 = vmatprep.mubr.f32.mxu0 0.0
        %550 = vmatmul.mubr.f32.gmra.mrb[0].mxu0 %v372
        %v551 = vpop.f32.mrb[0].mxu0
        %v552 = vadd.f32 %v357, %v551
        %v553 = vpop.f32.mrb[0].mxu0
        %v554 = vadd.f32 %v357, %v553
        %555 = vmatprep.mubr.f32.mxu0 0.0
        %556 = vmatmul.mubr.f32.gmra.mrb[0].mxu0 %v375
        %v557 = vpop.f32.mrb[0].mxu0
        %v558 = vadd.f32 %v362, %v557
        %v559 = vpop.f32.mrb[0].mxu0
        %v560 = vadd.f32 %v362, %v559
        %561 = vdwg.mxu0
        %v562 = vtanh.pop %v540
        %v563 = vtanh.pop %v542
        %v564 = vtanh.pop %v546
        %v565 = vtanh.pop %v548
        %v566 = vtanh.pop %v552
        %v567 = vtanh.pop %v554
        %v568 = vtanh.pop %v558
        %v569 = vtanh.pop %v560
        %v570 = vld [vmem:[%s3] sm:$0xff]
        %v571 = vld [vmem:[%s3 + $0x8] sm:$0xff]
        %v572 = vld [vmem:[%s3 + $0x10] sm:$0xff]
        %v573 = vld [vmem:[%s3 + $0x18] sm:$0xff]
        %v574 = vld [vmem:[%s4] sm:$0xff]
        %v575 = vld [vmem:[%s4 + $0x8] sm:$0xff]
        %v576 = vld [vmem:[%s4 + $0x10] sm:$0xff]
        %v577 = vld [vmem:[%s4 + $0x18] sm:$0xff]
        %579 = vset.pattern.permute.xlu0 0
        %580 = vperm.xlu0 %579, %v574
        %v581 = vpop.permute.xlu0 %580
        %584 = vset.pattern.permute.xlu0 0
        %585 = vperm.xlu0 %584, %v575
        %v586 = vpop.permute.xlu0 %585
        %589 = vset.pattern.permute.xlu0 0
        %590 = vperm.xlu0 %589, %v576
        %v591 = vpop.permute.xlu0 %590
        %594 = vset.pattern.permute.xlu0 0
        %595 = vperm.xlu0 %594, %v577
        %v596 = vpop.permute.xlu0 %595
        %vm598 = vcmask 261120
        %v600 = vsel %vm598, %v570, 0
        %v603 = vsel %vm598, %v571, 0
        %v606 = vsel %vm598, %v572, 0
        %v609 = vsel %vm598, %v573, 0
        %611 = vmatprep.subr.mxu0 %v563
        %612 = vmatpush1.msra.mxu0 %v562
        %613 = vmatprep.subr.mxu0 %v565
        %614 = vmatpush1.msra.mxu0 %v564
        %615 = vmatprep.subr.mxu0 %v567
        %616 = vmatpush1.msra.mxu0 %v566
        %617 = vmatprep.subr.mxu0 %v569
        %618 = vmatpush1.msra.mxu0 %v568
        %619 = vmatprep.subr.mxu0 0.0
        %620 = vmatpush1.msra.mxu0 0.0
        %621 = vmatprep.subr.mxu0 0.0
        %622 = vmatpush1.msra.mxu0 0.0
        %623 = vmatprep.subr.mxu0 0.0
        %624 = vmatpush1.msra.mxu0 0.0
        %625 = vmatprep.subr.mxu0 0.0
        %626 = vmatpush1.msra.mxu0 0.0
        %627 = vmatprep.subr.mxu0 0.0
        %628 = vmatpush1.msra.mxu0 0.0
        %629 = vmatprep.subr.mxu0 0.0
        %630 = vmatpush1.msra.mxu0 0.0
        %631 = vmatprep.subr.mxu0 0.0
        %632 = vmatpush1.msra.mxu0 0.0
        %633 = vmatprep.subr.mxu0 0.0
        %634 = vmatpush1.msra.mxu0 0.0
        %635 = vmatprep.subr.mxu0 0.0
        %636 = vmatpush1.msra.mxu0 0.0
        %637 = vmatprep.subr.mxu0 0.0
        %638 = vmatpush1.msra.mxu0 0.0
        %639 = vmatprep.subr.mxu0 0.0
        %640 = vmatpush1.msra.mxu0 0.0
        %641 = vmatprep.subr.mxu0 0.0
        %642 = vmatpush1.msra.mxu0 0.0
        %643 = vmatprep.subr.mxu0 0.0
        %644 = vmatpush1.msra.mxu0 0.0
        %645 = vmatprep.subr.mxu0 0.0
        %646 = vmatpush1.msra.mxu0 0.0
        %647 = vmatprep.subr.mxu0 0.0
        %648 = vmatpush1.msra.mxu0 0.0
        %649 = vmatprep.subr.mxu0 0.0
        %650 = vmatpush1.msra.mxu0 0.0
        %651 = vmatprep.subr.mxu0 0.0
        %652 = vmatpush1.msra.mxu0 0.0
        %653 = vmatprep.subr.mxu0 0.0
        %654 = vmatpush1.msra.mxu0 0.0
        %655 = vmatprep.subr.mxu0 0.0
        %656 = vmatpush1.msra.mxu0 0.0
        %657 = vmatprep.subr.mxu0 0.0
        %658 = vmatpush1.msra.mxu0 0.0
        %659 = vmatprep.subr.mxu0 0.0
        %660 = vmatpush1.msra.mxu0 0.0
        %661 = vmatprep.subr.mxu0 0.0
        %662 = vmatpush1.msra.mxu0 0.0
        %663 = vmatprep.subr.mxu0 0.0
        %664 = vmatpush1.msra.mxu0 0.0
        %665 = vmatprep.subr.mxu0 0.0
        %666 = vmatpush1.msra.mxu0 0.0
        %667 = vmatprep.subr.mxu0 0.0
        %668 = vmatpush1.msra.mxu0 0.0
        %669 = vmatprep.subr.mxu0 0.0
        %670 = vmatpush1.msra.mxu0 0.0
        %671 = vmatprep.subr.mxu0 0.0
        %672 = vmatpush1.msra.mxu0 0.0
        %673 = vmatprep.subr.mxu0 0.0
        %674 = vmatpush1.msra.mxu0 0.0
        %675 = vmatprep.mubr.f32.mxu0 0.0
        %676 = vmatmul.mubr.f32.gmra.mrb[0].mxu0 %v600
        %v677 = vpop.f32.mrb[0].mxu0
        %v678 = vadd.f32 %v581, %v677
        %v679 = vpop.f32.mrb[0].mxu0
        %v680 = vadd.f32 %v581, %v679
        %681 = vmatprep.mubr.f32.mxu0 0.0
        %682 = vmatmul.mubr.f32.gmra.mrb[0].mxu0 %v603
        %v683 = vpop.f32.mrb[0].mxu0
        %v684 = vadd.f32 %v586, %v683
        %v685 = vpop.f32.mrb[0].mxu0
        %v686 = vadd.f32 %v586, %v685
        %687 = vmatprep.mubr.f32.mxu0 0.0
        %688 = vmatmul.mubr.f32.gmra.mrb[0].mxu0 %v606
        %v689 = vpop.f32.mrb[0].mxu0
        %v690 = vadd.f32 %v591, %v689
        %v691 = vpop.f32.mrb[0].mxu0
        %v692 = vadd.f32 %v591, %v691
        %693 = vmatprep.mubr.f32.mxu0 0.0
        %694 = vmatmul.mubr.f32.gmra.mrb[0].mxu0 %v609
        %v695 = vpop.f32.mrb[0].mxu0
        %v696 = vadd.f32 %v596, %v695
        %v697 = vpop.f32.mrb[0].mxu0
        %v698 = vadd.f32 %v596, %v697
        %699 = vdwg.mxu0
        %v700 = vtanh.pop %v678
        %v701 = vtanh.pop %v680
        %v702 = vtanh.pop %v684
        %v703 = vtanh.pop %v686
        %v704 = vtanh.pop %v690
        %v705 = vtanh.pop %v692
        %v706 = vtanh.pop %v696
        %v707 = vtanh.pop %v698
        %v708 = vld [vmem:[%s5] sm:$0x3]
        %v709 = vld [vmem:[%s6] sm:$0x3]
        %711 = vset.pattern.permute.xlu0 0
        %712 = vperm.xlu0 %711, %v709
        %v713 = vpop.permute.xlu0 %712
        %v716 = vsel %vm598, %v708, 0
        %718 = vmatprep.subr.mxu0 %v701
        %719 = vmatpush1.msra.mxu0 %v700
        %720 = vmatprep.subr.mxu0 %v703
        %721 = vmatpush1.msra.mxu0 %v702
        %722 = vmatprep.subr.mxu0 %v705
        %723 = vmatpush1.msra.mxu0 %v704
        %724 = vmatprep.subr.mxu0 %v707
        %725 = vmatpush1.msra.mxu0 %v706
        %726 = vmatprep.subr.mxu0 0.0
        %727 = vmatpush1.msra.mxu0 0.0
        %728 = vmatprep.subr.mxu0 0.0
        %729 = vmatpush1.msra.mxu0 0.0
        %730 = vmatprep.subr.mxu0 0.0
        %731 = vmatpush1.msra.mxu0 0.0
        %732 = vmatprep.subr.mxu0 0.0
        %733 = vmatpush1.msra.mxu0 0.0
        %734 = vmatprep.subr.mxu0 0.0
        %735 = vmatpush1.msra.mxu0 0.0
        %736 = vmatprep.subr.mxu0 0.0
        %737 = vmatpush1.msra.mxu0 0.0
        %738 = vmatprep.subr.mxu0 0.0
        %739 = vmatpush1.msra.mxu0 0.0
        %740 = vmatprep.subr.mxu0 0.0
        %741 = vmatpush1.msra.mxu0 0.0
        %742 = vmatprep.subr.mxu0 0.0
        %743 = vmatpush1.msra.mxu0 0.0
        %744 = vmatprep.subr.mxu0 0.0
        %745 = vmatpush1.msra.mxu0 0.0
        %746 = vmatprep.subr.mxu0 0.0
        %747 = vmatpush1.msra.mxu0 0.0
        %748 = vmatprep.subr.mxu0 0.0
        %749 = vmatpush1.msra.mxu0 0.0
        %750 = vmatprep.subr.mxu0 0.0
        %751 = vmatpush1.msra.mxu0 0.0
        %752 = vmatprep.subr.mxu0 0.0
        %753 = vmatpush1.msra.mxu0 0.0
        %754 = vmatprep.subr.mxu0 0.0
        %755 = vmatpush1.msra.mxu0 0.0
        %756 = vmatprep.subr.mxu0 0.0
        %757 = vmatpush1.msra.mxu0 0.0
        %758 = vmatprep.subr.mxu0 0.0
        %759 = vmatpush1.msra.mxu0 0.0
        %760 = vmatprep.subr.mxu0 0.0
        %761 = vmatpush1.msra.mxu0 0.0
        %762 = vmatprep.subr.mxu0 0.0
        %763 = vmatpush1.msra.mxu0 0.0
        %764 = vmatprep.subr.mxu0 0.0
        %765 = vmatpush1.msra.mxu0 0.0
        %766 = vmatprep.subr.mxu0 0.0
        %767 = vmatpush1.msra.mxu0 0.0
        %768 = vmatprep.subr.mxu0 0.0
        %769 = vmatpush1.msra.mxu0 0.0
        %770 = vmatprep.subr.mxu0 0.0
        %771 = vmatpush1.msra.mxu0 0.0
        %772 = vmatprep.subr.mxu0 0.0
        %773 = vmatpush1.msra.mxu0 0.0
        %774 = vmatprep.subr.mxu0 0.0
        %775 = vmatpush1.msra.mxu0 0.0
        %776 = vmatprep.subr.mxu0 0.0
        %777 = vmatpush1.msra.mxu0 0.0
        %778 = vmatprep.subr.mxu0 0.0
        %779 = vmatpush1.msra.mxu0 0.0
        %780 = vmatprep.subr.mxu0 0.0
        %781 = vmatpush1.msra.mxu0 0.0
        %782 = vmatprep.mubr.f32.mxu0 0.0
        %783 = vmatmul.mubr.f32.gmra.mrb[0].mxu0 %v716
        %v784 = vpop.f32.mrb[0].mxu0
        %v785 = vadd.f32 %v713, %v784
        %v786 = vpop.f32.mrb[0].mxu0
        %v787 = vadd.f32 %v713, %v786
        %788 = vdwg.mxu0
        %v791 = vcombine.low %v785, %v787
        %v793 = vunpack.c.l.s4 1983009808
        %v794 = vunpack.c.0.s8 %v793
        %v795 = vlaneseq
        %v796 = vshrl.u32 %v795, 7
        %v797 = vsub.s32 %v794, %v796
        %v798 = vrot.slane %v791, %v797
        %800 = vst [vmem:[%s284] sm:$0xf] %v798
        %s801 = sand.u32 %s181, 1
        %s802 = scalar_lea.sflag [#allocation3], %s801
        %s803 = sand.u32 %s181, 1
        %s804 = smul.addr %s803, 4
        %s805 = scalar_lea.vmem [#allocation2], %s804
        // Predicated region
        $region49: #{workflow_forward.1} parent=47 // pred_check
          %p806 = pneg %p191
        $region50: #{workflow_forward.1} parent=47 // pred_check_branch
          %808 = sbr.rel (%p806) target = $region52
        $region51: #{workflow_forward.1} parent=47 // pred_region
          %s809 = smul.u32 2, %s21
          %s810 = ssub.s32 3, %s809
          %p811 = scmp.lt.s32.totalorder %s810, 2
          %s812 = scalar_select %p811, %s810, 2
          %s813 = smul.u32 32, %s812
          %s815 = ssub.s32 64, %s813
          %816 = vsyncadd %s802, %s815
          %p817 = scmp.ne.s32.totalorder 0, %s813
          %s818 = smul.addr %s809, 32
          %s819 = scalar_lea.hbm %s7, %s818
          %s820 = smul.u32 %s812, 2
          %s821 = sshll.u32 %s820, 4
          %s822 = sshll.u32 %s805, 4
          %s823 = int_to_ptr.vmem [resolvable:$true] %s822
          %825 = dma.vmem_to_hbm [thread:$0]  (%p817), %s823, %s821, %s819, %s802
        $region52: #{workflow_forward.1} parent=47 // pred_fallthru
          _
      $region48: #{workflow_forward.1} parent=5 // pred_fallthru
        _
      %p826 = scmp.le.s32.totalorder 2, %s16
      // Predicated region
      $region53: #{workflow_forward.1} parent=5 // pred_check
        %p827 = pneg %p826
      $region54: #{workflow_forward.1} parent=5 // pred_check_branch
        %829 = sbr.rel (%p827) target = $region56
      $region55: #{workflow_forward.1} parent=5 // pred_region
        %s830 = ssub.s32 %s16, 2
        // Predicated region
        $region57: #{workflow_forward.1} parent=55 // pred_check
          %p831 = pneg %p197
        $region58: #{workflow_forward.1} parent=55 // pred_check_branch
          %833 = sbr.rel (%p831) target = $region60
        $region59: #{workflow_forward.1} parent=55 // pred_region
          %s834 = sand.u32 %s182, 1
          %s835 = scalar_lea.sflag [#allocation3], %s834
          %s836 = sand.u32 %s182, 1
          %s837 = smul.addr %s836, 4
          %s838 = scalar_lea.vmem [#allocation2], %s837
          %839 = dma.done %s835, 64
        $region60: #{workflow_forward.1} parent=55 // pred_fallthru
          _
      $region56: #{workflow_forward.1} parent=5 // pred_fallthru
        _
    $region6: #{workflow_forward.1} parent=1 // loop_footer
      %s20 = sadd.s32 1, %s16
    $region7: #{workflow_forward.1} parent=1 // loop_footer_branch
      %15 = sbr.rel target = $region3
    $region8: #{workflow_forward.1} parent=1 // loop_exit
      _
    %840 = vsyncpa [#allocation3], 1
    %s841 = scalar_lea.sflag [#allocation3], 1
    %842 = vsyncpa %s841, 1

</llo_original>
